<compile_context>
chip_gen: v7x
topology: tpu7x:2x2x1
jax: 0.10.0
libtpu: 0.0.40
codegen_flags: <defaults>
</compile_context>

<pallas_src>
import functools

import jax
import jax.numpy as jnp
from jax.experimental import pallas as pl
from jax.experimental.pallas import tpu as pltpu


def _round_up(x, m):
    return (x + m - 1) // m * m


def critic_kernel(x_ref, w1_ref, b1_ref, w2_ref, b2_ref, out_ref):
    """One batch tile.

    x_ref  : (S, Bt)  activations, batch on the lane axis
    w1_ref : (H, S)   fc1 weight, native PyTorch layout, VMEM-resident
    b1_ref : (H, 1)   fc1 bias column
    w2_ref : (H, 1)   fc2 weight column
    b2_ref : (1,)     fc2 bias scalar (SMEM)
    out_ref: (1, Bt)  lane-dense value row
    """
    # Layer 1 on the MXU: (H, S) @ (S, Bt) -> (H, Bt); batch stays on lanes.
    h = jnp.dot(w1_ref[...], x_ref[...], preferred_element_type=jnp.float32)
    h = jnp.maximum(h + b1_ref[...], 0.0)            # bias + ReLU on the VPU
    # Layer 2 (single output feature): VPU multiply + sublane reduction
    # instead of an N=1 MXU matmul. Result is already lane-dense (1, Bt),
    # so the store is a full-width unmasked vector store.
    v = jnp.sum(h * w2_ref[...], axis=0, keepdims=True) + b2_ref[0]
    out_ref[...] = v.astype(out_ref.dtype)


def prepare_critic_params(w1, b1, w2, b2):
    """One-time (init) conversion from PyTorch Linear layout to kernel layout.

    w1: (H, S), b1: (H,), w2: (1, H), b2: (1,)  ->  ((H,S), (H,1), (H,1), (1,))
    """
    w1 = jnp.asarray(w1, jnp.float32)                      # (H, S), used as-is
    b1_col = jnp.asarray(b1, jnp.float32).reshape(-1, 1)   # (H, 1)
    w2_col = jnp.asarray(w2, jnp.float32).reshape(-1, 1)   # (1, H) -> (H, 1)
    b2 = jnp.asarray(b2, jnp.float32).reshape(1)           # (1,), lives in SMEM
    return w1, b1_col, w2_col, b2


@functools.partial(jax.jit, static_argnames=("batch_tile",))
def critic_net_forward(state, params, *, batch_tile=512):
    """state: (B, state_dim) f32. params: output of prepare_critic_params.
    Returns the critic value, shape (B, 1)."""
    w1, b1_col, w2_col, b2 = params
    B, S = state.shape
    H = w1.shape[0]

    # Batch tile: multiple of 128 lanes, capped at batch_tile (default 512,
    # a good spot for amortizing the ~0.35 us per-grid-step overhead).
    bt = max(128, min(batch_tile, _round_up(B, 128)))
    Bp = _round_up(B, bt)

    # Per-call layout plumbing only: put batch on the lane axis and pad to the
    # tile size. Rows are independent, so zero-padded rows are just sliced off.
    xT = jnp.asarray(state, jnp.float32).T             # (S, B)
    if Bp != B:
        xT = jnp.pad(xT, ((0, 0), (0, Bp - B)))        # (S, Bp)

    out_row = pl.pallas_call(
        critic_kernel,
        out_shape=jax.ShapeDtypeStruct((1, Bp), jnp.float32),
        grid=(Bp // bt,),
        in_specs=[
            pl.BlockSpec((S, bt), lambda i: (0, i)),            # activations
            pl.BlockSpec((H, S), lambda i: (0, 0)),             # w1 (resident)
            pl.BlockSpec((H, 1), lambda i: (0, 0)),             # b1 (resident)
            pl.BlockSpec((H, 1), lambda i: (0, 0)),             # w2 (resident)
            pl.BlockSpec(memory_space=pltpu.MemorySpace.SMEM),  # b2 scalar
        ],
        out_specs=pl.BlockSpec((1, bt), lambda i: (0, i)),      # lane-dense out
        compiler_params=pltpu.CompilerParams(
            dimension_semantics=("parallel",)),                 # v7x: 2 TCs
    )(xT, w1, b1_col, w2_col, b2)

    return out_row[0, :B].reshape(B, 1)


if __name__ == "__main__":
    # Pendulum-v1: state_dim = 3; small hidden dim.
    state_dim, hidden_dim, action_dim = 3, 32, 1

    key = jax.random.PRNGKey(0)
    k_x, k_w1, k_b1, k_w2, k_b2 = jax.random.split(key, 5)

    # Deterministic synthetic parameters in PyTorch Linear layout.
    w1 = jax.random.normal(k_w1, (hidden_dim, state_dim), jnp.float32) * 0.1
    b1 = jax.random.normal(k_b1, (hidden_dim,), jnp.float32) * 0.1
    w2 = jax.random.normal(k_w2, (1, hidden_dim), jnp.float32) * 0.1
    b2 = jax.random.normal(k_b2, (1,), jnp.float32) * 0.1

    # One-time layout conversion ("module init"), not in the per-call path.
    params = prepare_critic_params(w1, b1, w2, b2)

    # Exercise the padded single-tile path (B=8) and a larger padded tile
    # (B=200 -> tile of 256 lanes).
    for batch in (8, 200):
        state = jax.random.normal(jax.random.fold_in(k_x, batch),
                                  (batch, state_dim), jnp.float32)
        out = jax.block_until_ready(critic_net_forward(state, params))

        # Pure-JAX reference check against the PyTorch-layout math.
        ref = jnp.maximum(state @ w1.T + b1, 0.0) @ w2.T + b2
        assert out.shape == (batch, 1), out.shape
        assert jnp.allclose(out, ref, atol=1e-5, rtol=1e-5), \
            f"mismatch vs reference at batch={batch}"

    print("KERNEL_OK")
</pallas_src>

<mosaic_0001>
module attributes {stable_mosaic.version = 11 : i64} {
  func.func @critic_kernel(%arg0: i32, %arg1: memref<3x128xf32, #tpu.memory_space<vmem>>, %arg2: memref<32x3xf32, #tpu.memory_space<vmem>>, %arg3: memref<32x1xf32, #tpu.memory_space<vmem>>, %arg4: memref<32x1xf32, #tpu.memory_space<vmem>>, %arg5: memref<1xf32, #tpu.memory_space<smem>>, %arg6: memref<1x128xf32, #tpu.memory_space<vmem>>) attributes {dimension_semantics = [#tpu.dimension_semantics<parallel>], iteration_bounds = array<i64: 1>, scalar_prefetch = 0 : i64, scratch_operands = 0 : i64, tpu.core_type = #tpu.core_type<tc>, window_params = [{transform_indices = @transform_0, window_bounds = array<i64: 3, 128>}, {pipeline_mode = #tpu.pipeline_mode<synchronous>, transform_indices = @transform_1, window_bounds = array<i64: 32, 3>}, {pipeline_mode = #tpu.pipeline_mode<synchronous>, transform_indices = @transform_2, window_bounds = array<i64: 32, 1>}, {pipeline_mode = #tpu.pipeline_mode<synchronous>, transform_indices = @transform_3, window_bounds = array<i64: 32, 1>}, {transform_indices = @transform_4, window_bounds = array<i64: 1>}, {transform_indices = @transform_5, window_bounds = array<i64: 1, 128>}]} {
    %c0 = arith.constant 0 : index
    %c0_0 = arith.constant 0 : index
    %0 = vector.load %arg2[%c0, %c0_0] : memref<32x3xf32, #tpu.memory_space<vmem>>, vector<32x3xf32>
    %c0_1 = arith.constant 0 : index
    %c0_2 = arith.constant 0 : index
    %1 = vector.load %arg1[%c0_1, %c0_2] : memref<3x128xf32, #tpu.memory_space<vmem>>, vector<3x128xf32>
    %cst = arith.constant dense<0.000000e+00> : vector<32x128xf32>
    %2 = tpu.matmul %0, %1, %cst {dimension_numbers = #tpu.dot_dimension_numbers<[1], [0], [0], [1], [0, 0, 1, 1], [], []>} : vector<32x3xf32>, vector<3x128xf32>, vector<32x128xf32> -> vector<32x128xf32>
    %c0_3 = arith.constant 0 : index
    %c0_4 = arith.constant 0 : index
    %3 = vector.load %arg3[%c0_3, %c0_4] : memref<32x1xf32, #tpu.memory_space<vmem>>, vector<32x1xf32>
    %4 = vector.broadcast %3 : vector<32x1xf32> to vector<32x128xf32>
    %5 = arith.addf %2, %4 : vector<32x128xf32>
    %cst_5 = arith.constant 0.000000e+00 : f32
    %6 = vector.broadcast %cst_5 : f32 to vector<32x128xf32>
    %7 = arith.maximumf %5, %6 : vector<32x128xf32>
    %c0_6 = arith.constant 0 : index
    %c0_7 = arith.constant 0 : index
    %8 = vector.load %arg4[%c0_6, %c0_7] : memref<32x1xf32, #tpu.memory_space<vmem>>, vector<32x1xf32>
    %9 = vector.broadcast %8 : vector<32x1xf32> to vector<32x128xf32>
    %10 = arith.mulf %7, %9 : vector<32x128xf32>
    %cst_8 = arith.constant dense<0.000000e+00> : vector<128xf32>
    %11 = vector.multi_reduction <add>, %10, %cst_8 [0] : vector<32x128xf32> to vector<128xf32>
    %12 = vector.shape_cast %11 : vector<128xf32> to vector<1x128xf32>
    %c0_9 = arith.constant 0 : index
    %13 = memref.load %arg5[%c0_9] : memref<1xf32, #tpu.memory_space<smem>>
    %14 = vector.broadcast %13 : f32 to vector<1x128xf32>
    %15 = arith.addf %12, %14 : vector<1x128xf32>
    %c0_10 = arith.constant 0 : index
    %c0_11 = arith.constant 0 : index
    %16 = vector.load %arg6[%c0_10, %c0_11] : memref<1x128xf32, #tpu.memory_space<vmem>>, vector<1x128xf32>
    tpu.vector_store %arg6[%c0_10, %c0_11], %15 {strides = array<i32>} : memref<1x128xf32, #tpu.memory_space<vmem>>, vector<1x128xf32>,
    return
  }
  func.func @transform_0(%arg0: i32) -> (i32, i32) {
    %c0_i32 = arith.constant 0 : i32
    %c0_i32_0 = arith.constant 0 : i32
    return %c0_i32, %arg0 : i32, i32
  }
  func.func @transform_1(%arg0: i32) -> (i32, i32) {
    %c0_i32 = arith.constant 0 : i32
    %c0_i32_0 = arith.constant 0 : i32
    %c0_i32_1 = arith.constant 0 : i32
    return %c0_i32, %c0_i32_0 : i32, i32
  }
  func.func @transform_2(%arg0: i32) -> (i32, i32) {
    %c0_i32 = arith.constant 0 : i32
    %c0_i32_0 = arith.constant 0 : i32
    %c0_i32_1 = arith.constant 0 : i32
    return %c0_i32, %c0_i32_0 : i32, i32
  }
  func.func @transform_3(%arg0: i32) -> (i32, i32) {
    %c0_i32 = arith.constant 0 : i32
    %c0_i32_0 = arith.constant 0 : i32
    %c0_i32_1 = arith.constant 0 : i32
    return %c0_i32, %c0_i32_0 : i32, i32
  }
  func.func @transform_4(%arg0: i32) -> i32 {
    %c0_i32 = arith.constant 0 : i32
    %c0_i32_0 = arith.constant 0 : i32
    return %c0_i32 : i32
  }
  func.func @transform_5(%arg0: i32) -> (i32, i32) {
    %c0_i32 = arith.constant 0 : i32
    %c0_i32_0 = arith.constant 0 : i32
    return %c0_i32, %arg0 : i32, i32
  }
}

</mosaic_0001>

<llo_original>
// kernel: critic_net_forward.1
$region0: #{critic_net_forward.1}
  #allocation0 [shape = 'u32[]', space=smem, size = 0x4, offset = 0x4, fixed_abs, tag = 'smem constant byte address 0x4 - core index']
  #allocation1 [shape = 'u32[144,128]{1,0:T(1,128)}', space=vmem, size = 0x12000, scoped, tag = 'internal scratch']
  #allocation2 [shape = 'f32[1]{0:T(128)S(6)}', space=smem, size = 0x200, scoped, tag = 'scoped memory for critic_net_forward.1']
  %s0 = inlined_call_operand.vmem [shape: f32[3,128], index: 0, kind: input, shape index: {}]
  %s1 = inlined_call_operand.vmem [shape: f32[32,3], index: 1, kind: input, shape index: {}]
  %s2 = inlined_call_operand.vmem [shape: f32[32,1], index: 2, kind: input, shape index: {}]
  %s3 = inlined_call_operand.vmem [shape: f32[32,1], index: 3, kind: input, shape index: {}]
  %s4 = inlined_call_operand.<no memory space> [shape: f32[1], index: 4, kind: input, shape index: {}]
  %s5 = inlined_call_operand.vmem [shape: f32[1,128], index: 5, kind: output, shape index: {}]
  %s6 = sld [smem:[#allocation0]]
  $region30: #{critic_net_forward.1} parent=0
    _
  %s8 = ssub.s32 1, %s6
  %s9 = scalar_select 0, %s8, %s6
  %10 = sst [smem:[#allocation2]] %s4
  // Predicated region
  $region2: #{critic_net_forward.1} parent=0 // pred_check
    _
  $region3: #{critic_net_forward.1} parent=0 // pred_check_branch
    %12 = sbr.rel (0) target = $region5
  $region4: #{critic_net_forward.1} parent=0 // pred_region
    _
  $region5: #{critic_net_forward.1} parent=0 // pred_fallthru
    _
  // Predicated region
  $region6: #{critic_net_forward.1} parent=0 // pred_check
    _
  $region7: #{critic_net_forward.1} parent=0 // pred_check_branch
    %14 = sbr.rel (0) target = $region9
  $region8: #{critic_net_forward.1} parent=0 // pred_region
    _
  $region9: #{critic_net_forward.1} parent=0 // pred_fallthru
    _
  // Predicated region
  $region10: #{critic_net_forward.1} parent=0 // pred_check
    _
  $region11: #{critic_net_forward.1} parent=0 // pred_check_branch
    %16 = sbr.rel (0) target = $region13
  $region12: #{critic_net_forward.1} parent=0 // pred_region
    _
  $region13: #{critic_net_forward.1} parent=0 // pred_fallthru
    _
  // Predicated region
  $region14: #{critic_net_forward.1} parent=0 // pred_check
    _
  $region15: #{critic_net_forward.1} parent=0 // pred_check_branch
    %18 = sbr.rel (0) target = $region17
  $region16: #{critic_net_forward.1} parent=0 // pred_region
    _
  $region17: #{critic_net_forward.1} parent=0 // pred_fallthru
    _
  // Predicated region
  $region18: #{critic_net_forward.1} parent=0 // pred_check
    _
  $region19: #{critic_net_forward.1} parent=0 // pred_check_branch
    %20 = sbr.rel (0) target = $region21
  $region20: #{critic_net_forward.1} parent=0 // pred_region
    _
  $region21: #{critic_net_forward.1} parent=0 // pred_fallthru
    _
  %v21 = vld [vmem:[%s1] sm:$0xff]
  %v22 = vld [vmem:[%s1 + $0x8] sm:$0xff]
  %v23 = vld [vmem:[%s1 + $0x10] sm:$0xff]
  %v24 = vld [vmem:[%s1 + $0x18] sm:$0xff]
  %v25 = vld [vmem:[%s0] sm:$0x7]
  %v26 = vld [vmem:[%s2] sm:$0xff]
  %v27 = vld [vmem:[%s2 + $0x8] sm:$0xff]
  %v28 = vld [vmem:[%s2 + $0x10] sm:$0xff]
  %v29 = vld [vmem:[%s2 + $0x18] sm:$0xff]
  %31 = vset.pattern.permute.xlu0 0
  %32 = vperm.xlu0 %31, %v26
  %v33 = vpop.permute.xlu0 %32
  %36 = vset.pattern.permute.xlu0 0
  %37 = vperm.xlu0 %36, %v27
  %v38 = vpop.permute.xlu0 %37
  %41 = vset.pattern.permute.xlu0 0
  %42 = vperm.xlu0 %41, %v28
  %v43 = vpop.permute.xlu0 %42
  %46 = vset.pattern.permute.xlu0 0
  %47 = vperm.xlu0 %46, %v29
  %v48 = vpop.permute.xlu0 %47
  %vm50 = vcmask 23552
  %v52 = vsel %vm50, %v21, 0
  %v55 = vsel %vm50, %v22, 0
  %v58 = vsel %vm50, %v23, 0
  %v61 = vsel %vm50, %v24, 0
  %vm63 = vcmask 1042432
  %v65 = vsel %vm63, %v25, 0
  %67 = vmatprep.subr.mxu0 0.0
  %68 = vmatpush1.msra.mxu0 %v65
  %69 = vmatprep.subr.mxu0 0.0
  %70 = vmatpush1.msra.mxu0 0.0
  %71 = vmatprep.subr.mxu0 0.0
  %72 = vmatpush1.msra.mxu0 0.0
  %73 = vmatprep.subr.mxu0 0.0
  %74 = vmatpush1.msra.mxu0 0.0
  %75 = vmatprep.subr.mxu0 0.0
  %76 = vmatpush1.msra.mxu0 0.0
  %77 = vmatprep.subr.mxu0 0.0
  %78 = vmatpush1.msra.mxu0 0.0
  %79 = vmatprep.subr.mxu0 0.0
  %80 = vmatpush1.msra.mxu0 0.0
  %81 = vmatprep.subr.mxu0 0.0
  %82 = vmatpush1.msra.mxu0 0.0
  %83 = vmatprep.subr.mxu0 0.0
  %84 = vmatpush1.msra.mxu0 0.0
  %85 = vmatprep.subr.mxu0 0.0
  %86 = vmatpush1.msra.mxu0 0.0
  %87 = vmatprep.subr.mxu0 0.0
  %88 = vmatpush1.msra.mxu0 0.0
  %89 = vmatprep.subr.mxu0 0.0
  %90 = vmatpush1.msra.mxu0 0.0
  %91 = vmatprep.subr.mxu0 0.0
  %92 = vmatpush1.msra.mxu0 0.0
  %93 = vmatprep.subr.mxu0 0.0
  %94 = vmatpush1.msra.mxu0 0.0
  %95 = vmatprep.subr.mxu0 0.0
  %96 = vmatpush1.msra.mxu0 0.0
  %97 = vmatprep.subr.mxu0 0.0
  %98 = vmatpush1.msra.mxu0 0.0
  %99 = vmatprep.subr.mxu0 0.0
  %100 = vmatpush1.msra.mxu0 0.0
  %101 = vmatprep.subr.mxu0 0.0
  %102 = vmatpush1.msra.mxu0 0.0
  %103 = vmatprep.subr.mxu0 0.0
  %104 = vmatpush1.msra.mxu0 0.0
  %105 = vmatprep.subr.mxu0 0.0
  %106 = vmatpush1.msra.mxu0 0.0
  %107 = vmatprep.subr.mxu0 0.0
  %108 = vmatpush1.msra.mxu0 0.0
  %109 = vmatprep.subr.mxu0 0.0
  %110 = vmatpush1.msra.mxu0 0.0
  %111 = vmatprep.subr.mxu0 0.0
  %112 = vmatpush1.msra.mxu0 0.0
  %113 = vmatprep.subr.mxu0 0.0
  %114 = vmatpush1.msra.mxu0 0.0
  %115 = vmatprep.subr.mxu0 0.0
  %116 = vmatpush1.msra.mxu0 0.0
  %117 = vmatprep.subr.mxu0 0.0
  %118 = vmatpush1.msra.mxu0 0.0
  %119 = vmatprep.subr.mxu0 0.0
  %120 = vmatpush1.msra.mxu0 0.0
  %121 = vmatprep.subr.mxu0 0.0
  %122 = vmatpush1.msra.mxu0 0.0
  %123 = vmatprep.subr.mxu0 0.0
  %124 = vmatpush1.msra.mxu0 0.0
  %125 = vmatprep.subr.mxu0 0.0
  %126 = vmatpush1.msra.mxu0 0.0
  %127 = vmatprep.subr.mxu0 0.0
  %128 = vmatpush1.msra.mxu0 0.0
  %129 = vmatprep.subr.mxu0 0.0
  %130 = vmatpush1.msra.mxu0 0.0
  %131 = vmatprep.mubr.f32.mxu0 0.0
  %132 = vmatmul.mubr.f32.gmra.mrb[0].mxu0 %v52
  %v133 = vpop.f32.mrb[0].mxu0
  %v134 = vadd.f32 %v33, %v133
  %v135 = vpop.f32.mrb[0].mxu0
  %136 = vmatprep.mubr.f32.mxu0 0.0
  %137 = vmatmul.mubr.f32.gmra.mrb[0].mxu0 %v55
  %v138 = vpop.f32.mrb[0].mxu0
  %v139 = vadd.f32 %v38, %v138
  %v140 = vpop.f32.mrb[0].mxu0
  %141 = vmatprep.mubr.f32.mxu0 0.0
  %142 = vmatmul.mubr.f32.gmra.mrb[0].mxu0 %v58
  %v143 = vpop.f32.mrb[0].mxu0
  %v144 = vadd.f32 %v43, %v143
  %v145 = vpop.f32.mrb[0].mxu0
  %146 = vmatprep.mubr.f32.mxu0 0.0
  %147 = vmatmul.mubr.f32.gmra.mrb[0].mxu0 %v61
  %v148 = vpop.f32.mrb[0].mxu0
  %v149 = vadd.f32 %v48, %v148
  %v150 = vpop.f32.mrb[0].mxu0
  %151 = vdwg.mxu0
  %v152 = vmax.f32 %v134, 0.0
  %v153 = vmax.f32 %v139, 0.0
  %v154 = vmax.f32 %v144, 0.0
  %v155 = vmax.f32 %v149, 0.0
  %v156 = vld [vmem:[%s3] sm:$0xff]
  %v157 = vld [vmem:[%s3 + $0x8] sm:$0xff]
  %v158 = vld [vmem:[%s3 + $0x10] sm:$0xff]
  %v159 = vld [vmem:[%s3 + $0x18] sm:$0xff]
  %161 = vset.pattern.permute.xlu0 0
  %162 = vperm.xlu0 %161, %v156
  %v163 = vpop.permute.xlu0 %162
  %166 = vset.pattern.permute.xlu0 0
  %167 = vperm.xlu0 %166, %v157
  %v168 = vpop.permute.xlu0 %167
  %171 = vset.pattern.permute.xlu0 0
  %172 = vperm.xlu0 %171, %v158
  %v173 = vpop.permute.xlu0 %172
  %176 = vset.pattern.permute.xlu0 0
  %177 = vperm.xlu0 %176, %v159
  %v178 = vpop.permute.xlu0 %177
  %v180 = vmul.f32 %v152, %v163
  %v181 = vmul.f32 %v153, %v168
  %v182 = vmul.f32 %v154, %v173
  %v183 = vmul.f32 %v155, %v178
  %v184 = vadd.f32 %v180, %v181
  %v185 = vadd.f32 %v184, %v182
  %v186 = vadd.f32 %v185, %v183
  %v187 = vrot.slane %v186, 4
  %v188 = vadd.f32 %v186, %v187
  %v189 = vrot.slane %v188, 2
  %v190 = vadd.f32 %v188, %v189
  %v191 = vrot.slane %v190, 1
  %v192 = vadd.f32 %v190, %v191
  %s193 = sld [smem:[#allocation2]]
  %v194 = vstv %s193
  %v195 = vadd.f32 %v192, %v194
  %196 = vst [vmem:[%s5] sm:$0x1] %v195
  // Predicated region
  $region22: #{critic_net_forward.1} parent=0 // pred_check
    _
  $region23: #{critic_net_forward.1} parent=0 // pred_check_branch
    %198 = sbr.rel (0) target = $region25
  $region24: #{critic_net_forward.1} parent=0 // pred_region
    _
  $region25: #{critic_net_forward.1} parent=0 // pred_fallthru
    _
  // Predicated region
  $region26: #{critic_net_forward.1} parent=0 // pred_check
    _
  $region27: #{critic_net_forward.1} parent=0 // pred_check_branch
    %200 = sbr.rel (0) target = $region29
  $region28: #{critic_net_forward.1} parent=0 // pred_region
    _
  $region29: #{critic_net_forward.1} parent=0 // pred_fallthru
    _

</llo_original>
